<compile_context>
chip_gen: v7x
topology: tpu7x:2x2x1
jax: 0.10.0
libtpu: 0.0.40
codegen_flags: <defaults>
</compile_context>

<pallas_src>
import math
import functools

import jax
import jax.numpy as jnp
from jax import lax
from jax.experimental import pallas as pl
from jax.experimental.pallas import tpu as pltpu


def _pe_table(max_len: int, d_model: int) -> jnp.ndarray:
    """Sinusoidal table, identical math to the PyTorch __init__ buffer."""
    assert d_model % 2 == 0, "d_model must be even for sin/cos interleave"
    position = jnp.arange(max_len, dtype=jnp.float32)[:, None]            # [L,1]
    div_term = jnp.exp(
        jnp.arange(0, d_model, 2, dtype=jnp.float32)
        * (-math.log(10000.0) / d_model)
    )                                                                      # [D/2]
    pe = jnp.zeros((max_len, d_model), jnp.float32)
    pe = pe.at[:, 0::2].set(jnp.sin(position * div_term))
    pe = pe.at[:, 1::2].set(jnp.cos(position * div_term))
    return pe                                                              # [L,D]


def _pos_enc_kernel(seed_ref, x_ref, pe_ref, o_ref, *,
                    batch: int, tile_rows: int, p: float, training: bool):
    # seed_ref : (1,) int32 scalar-prefetch (SMEM)
    # x_ref    : (tile_rows, B*D) VMEM
    # pe_ref   : (tile_rows, D)   VMEM
    # o_ref    : (tile_rows, B*D) VMEM
    x = x_ref[...]
    pe = pe_ref[...]
    # Replicate pe across the batch chunks of the folded lane axis.
    pe_rep = pe if batch == 1 else jnp.concatenate([pe] * batch, axis=-1)
    y = x.astype(jnp.float32) + pe_rep

    if training and p > 0.0:
        rows, cols = y.shape
        # Global flat element index -> distinct dropout mask per tile.
        base = pl.program_id(0) * (tile_rows * cols)
        flat = (base
                + lax.broadcasted_iota(jnp.int32, (rows, cols), 0) * cols
                + lax.broadcasted_iota(jnp.int32, (rows, cols), 1))
        # Counter-based integer hash (xorshift-multiply); keeps everything on
        # the VPU integer path, no float convert / [0,1) scaling needed.
        seed_u = seed_ref[0].astype(jnp.uint32)
        h = flat.astype(jnp.uint32) ^ (seed_u * jnp.uint32(0x9E3779B9))
        h = (h ^ (h >> jnp.uint32(16))) * jnp.uint32(0x045D9F3B)
        h = (h ^ (h >> jnp.uint32(16))) * jnp.uint32(0x045D9F3B)
        h = h ^ (h >> jnp.uint32(16))
        key = (h & jnp.uint32(0x00FFFFFF)).astype(jnp.int32)
        threshold = jnp.int32(int(round(p * float(1 << 24))))
        keep = key >= threshold                      # keep w.p. (1 - p)
        y = jnp.where(keep, y * jnp.float32(1.0 / (1.0 - p)), jnp.zeros_like(y))

    o_ref[...] = y.astype(o_ref.dtype)


def positional_encoding(
    x: jnp.ndarray,
    pe_full: jnp.ndarray,
    *,
    p: float = 0.1,
    training: bool = False,
    seed: int = 0,
    max_tile_rows: int | None = None,
) -> jnp.ndarray:
    """x: [seq_len, batch, d_model]; pe_full: [max_len, d_model]."""
    S, B, D = x.shape
    assert pe_full.shape[0] >= S and pe_full.shape[1] == D
    BD = B * D
    itemsize = jnp.dtype(x.dtype).itemsize

    x2 = x.reshape(S, BD)                 # free row-major view (lane-dense)
    pe_slice = pe_full[:S]                # [S, D]
    seed_arr = jnp.array([seed], dtype=jnp.int32)

    # Tile-row choice: target ~4 MiB per x tile so the double-buffered working
    # set (x + out + pe) stays ~<= 20 MiB, inside the 32 MiB scoped-VMEM limit
    # requested below (safe on all of v5e / v6e / v7x).
    row_bytes = max(1, BD * itemsize)
    ts = max(1, min(S, (4 * 1024 * 1024) // row_bytes))
    if max_tile_rows is not None:
        ts = max(1, min(ts, int(max_tile_rows)))
    if ts < S:
        ts = min(S, max(8, (ts // 8) * 8))   # keep sublane-aligned blocks
    num_tiles = pl.cdiv(S, ts)

    kernel = functools.partial(
        _pos_enc_kernel, batch=B, tile_rows=ts, p=float(p), training=bool(training)
    )

    grid_spec = pltpu.PrefetchScalarGridSpec(
        num_scalar_prefetch=1,               # seed lands in SMEM
        grid=(num_tiles,),
        in_specs=[
            pl.BlockSpec((ts, BD), lambda i, seed_ref: (i, 0)),   # x tile
            pl.BlockSpec((ts, D),  lambda i, seed_ref: (i, 0)),   # pe tile (read once)
        ],
        out_specs=pl.BlockSpec((ts, BD), lambda i, seed_ref: (i, 0)),
    )

    cost = pl.CostEstimate(
        flops=int(S * BD),
        transcendentals=0,
        bytes_accessed=int((2 * S * BD + S * D) * itemsize),
    )

    out2 = pl.pallas_call(
        kernel,
        grid_spec=grid_spec,
        out_shape=jax.ShapeDtypeStruct((S, BD), x.dtype),
        compiler_params=pltpu.CompilerParams(
            dimension_semantics=("parallel",),      # shard grid across TCs (v7x)
            vmem_limit_bytes=32 * 1024 * 1024,
        ),
        cost_estimate=cost,
    )(seed_arr, x2, pe_slice)

    return out2.reshape(S, B, D)


if __name__ == "__main__":
    d_model = 32
    max_len = 64   # module default is 5000; 64 suffices for these tests
    pe_full = _pe_table(max_len, d_model)

    key = jax.random.PRNGKey(0)

    # 1) eval mode (dropout is identity), single-tile path: [seq=8, batch=2, d=32]
    x1 = jax.random.normal(key, (8, 2, d_model), dtype=jnp.float32)
    out1 = jax.block_until_ready(positional_encoding(x1, pe_full, p=0.1, training=False))
    ref1 = x1 + pe_full[:8][:, None, :]
    assert out1.shape == x1.shape
    assert jnp.allclose(out1, ref1, atol=1e-6), "eval-mode mismatch (single tile)"

    # 2) eval mode, multi-tile grid path: force 8-row tiles over seq=24
    x2 = jax.random.normal(jax.random.PRNGKey(1), (24, 2, d_model), dtype=jnp.float32)
    out2 = jax.block_until_ready(
        positional_encoding(x2, pe_full, p=0.1, training=False, max_tile_rows=8))
    ref2 = x2 + pe_full[:24][:, None, :]
    assert jnp.allclose(out2, ref2, atol=1e-6), "eval-mode mismatch (multi tile)"

    # 3) training mode: inverted dropout — zeros w.p. p, survivors scaled 1/(1-p)
    p = 0.1
    out3 = jax.block_until_ready(
        positional_encoding(x1, pe_full, p=p, training=True, seed=1234))
    assert out3.shape == x1.shape
    scaled_ref = ref1 / (1.0 - p)
    dropped = out3 == 0
    n_drop = int(jnp.sum(dropped))
    assert 0 < n_drop < out3.size, "dropout mask degenerate"
    ok = jnp.where(dropped, True, jnp.abs(out3 - scaled_ref) < 1e-4)
    assert bool(jnp.all(ok)), "surviving elements not scaled by 1/(1-p)"

    print("KERNEL_OK")
</pallas_src>

<mosaic_0001>
module attributes {stable_mosaic.version = 11 : i64} {
  func.func @_pos_enc_kernel(%arg0: i32, %arg1: memref<1xi32, #tpu.memory_space<smem>>, %arg2: memref<8x64xf32, #tpu.memory_space<vmem>>, %arg3: memref<8x32xf32, #tpu.memory_space<vmem>>, %arg4: memref<8x64xf32, #tpu.memory_space<vmem>>) attributes {dimension_semantics = [#tpu.dimension_semantics<parallel>], iteration_bounds = array<i64: 1>, scalar_prefetch = 1 : i64, scratch_operands = 0 : i64, tpu.core_type = #tpu.core_type<tc>, window_params = [{transform_indices = @transform_0, window_bounds = array<i64: 8, 64>}, {transform_indices = @transform_1, window_bounds = array<i64: 8, 32>}, {transform_indices = @transform_2, window_bounds = array<i64: 8, 64>}]} {
    %c0 = arith.constant 0 : index
    %c0_0 = arith.constant 0 : index
    %0 = vector.load %arg2[%c0, %c0_0] : memref<8x64xf32, #tpu.memory_space<vmem>>, vector<8x64xf32>
    %c0_1 = arith.constant 0 : index
    %c0_2 = arith.constant 0 : index
    %1 = vector.load %arg3[%c0_1, %c0_2] : memref<8x32xf32, #tpu.memory_space<vmem>>, vector<8x32xf32>
    %2 = tpu.concatenate %1, %1 in 1 : vector<8x32xf32>, vector<8x32xf32> -> vector<8x64xf32>
    %3 = arith.addf %0, %2 : vector<8x64xf32>
    %c0_3 = arith.constant 0 : index
    %c0_4 = arith.constant 0 : index
    %4 = vector.load %arg4[%c0_3, %c0_4] : memref<8x64xf32, #tpu.memory_space<vmem>>, vector<8x64xf32>
    tpu.vector_store %arg4[%c0_3, %c0_4], %3 {strides = array<i32>} : memref<8x64xf32, #tpu.memory_space<vmem>>, vector<8x64xf32>,
    return
  }
  func.func @transform_0(%arg0: i32, %arg1: memref<1xi32, #tpu.memory_space<smem>>) -> (i32, i32) {
    %c0_i32 = arith.constant 0 : i32
    %c0_i32_0 = arith.constant 0 : i32
    return %arg0, %c0_i32 : i32, i32
  }
  func.func @transform_1(%arg0: i32, %arg1: memref<1xi32, #tpu.memory_space<smem>>) -> (i32, i32) {
    %c0_i32 = arith.constant 0 : i32
    %c0_i32_0 = arith.constant 0 : i32
    return %arg0, %c0_i32 : i32, i32
  }
  func.func @transform_2(%arg0: i32, %arg1: memref<1xi32, #tpu.memory_space<smem>>) -> (i32, i32) {
    %c0_i32 = arith.constant 0 : i32
    %c0_i32_0 = arith.constant 0 : i32
    return %arg0, %c0_i32 : i32, i32
  }
}

</mosaic_0001>

<llo_original>
// kernel: tpu_custom_call.1
$region0: #{tpu_custom_call.1}
  #allocation0 [shape = 'u32[]', space=smem, size = 0x4, offset = 0x4, fixed_abs, tag = 'smem constant byte address 0x4 - core index']
  #allocation1 [shape = 'u32[144,128]{1,0:T(1,128)}', space=vmem, size = 0x12000, scoped, tag = 'internal scratch']
  #allocation2 [shape = 's32[1]{0}', space=sflag, size = 0x4, scoped, tag = 'scoped memory for tpu_custom_call.1']
  #allocation3 [shape = 's32[1]{0:T(128)S(6)}', space=smem, size = 0x200, scoped, tag = 'prefetched SMEM operand 0']
  %s0 = inlined_call_operand.<no memory space> [shape: s32[1], index: 0, kind: input, shape index: {}]
  %s1 = inlined_call_operand.hbm [shape: f32[8,64], index: 1, kind: input, shape index: {}]
  %s2 = inlined_call_operand.hbm [shape: f32[8,32], index: 2, kind: input, shape index: {}]
  %s3 = inlined_call_operand.hbm [shape: f32[8,64], index: 3, kind: output, shape index: {}]
  %s4 = sld [smem:[#allocation0]]
  $region26: #{tpu_custom_call.1} parent=0
    _
  %s6 = ssub.s32 1, %s4
  %s7 = scalar_select 0, %s6, %s4
  %8 = sst [smem:[#allocation3]] %s0
  $region1: #{tpu_custom_call.1} parent=0
    #allocation4 [shape = 'u8[4096]{0}', space=vmem, size = 0x1000, scoped, tag = 'input window, operand 1, single buffered']
    #allocation5 [shape = 's32[1]{0}', space=sflag, size = 0x4, scoped, tag = 'scoped memory for tpu_custom_call.1']
    #allocation6 [shape = 's32[1]{0}', space=sflag, size = 0x4, scoped, tag = 'scoped memory for tpu_custom_call.1']
    #allocation7 [shape = 'u8[4096]{0}', space=vmem, size = 0x1000, scoped, tag = 'input window, operand 2, single buffered']
    #allocation8 [shape = 's32[1]{0}', space=sflag, size = 0x4, scoped, tag = 'scoped memory for tpu_custom_call.1']
    #allocation9 [shape = 'u8[4096]{0}', space=vmem, size = 0x1000, scoped, tag = 'output window, operand 0, single buffered']
    %9 = vsyncpa [#allocation5], 0
    %10 = vsyncpa [#allocation8], 0
    %11 = vsyncpa [#allocation6], 0
    // Predicated region
    $region2: #{tpu_custom_call.1} parent=1 // pred_check
      _
    $region3: #{tpu_custom_call.1} parent=1 // pred_check_branch
      %13 = sbr.rel (0) target = $region5
    $region4: #{tpu_custom_call.1} parent=1 // pred_region
      %s15 = ssub.s32 128, 128
      %16 = vsyncadd [#allocation5], %s15
      %s18 = sshll.u32 [#allocation4], 4
      %s19 = int_to_ptr.vmem [resolvable:$true] %s18
      %21 = dma.hbm_to_vmem [thread:$0]  %s1, 128, %s19, [#allocation5]
    $region5: #{tpu_custom_call.1} parent=1 // pred_fallthru
      _
    // Predicated region
    $region6: #{tpu_custom_call.1} parent=1 // pred_check
      _
    $region7: #{tpu_custom_call.1} parent=1 // pred_check_branch
      %23 = sbr.rel (0) target = $region9
    $region8: #{tpu_custom_call.1} parent=1 // pred_region
      %s25 = ssub.s32 128, 128
      %26 = vsyncadd [#allocation8], %s25
      %s28 = sshll.u32 [#allocation7], 4
      %s29 = int_to_ptr.vmem [resolvable:$true] %s28
      %31 = dma.hbm_to_vmem [thread:$0]  %s2, 128, %s29, [#allocation8]
    $region9: #{tpu_custom_call.1} parent=1 // pred_fallthru
      _
    // Predicated region
    $region10: #{tpu_custom_call.1} parent=1 // pred_check
      _
    $region11: #{tpu_custom_call.1} parent=1 // pred_check_branch
      %33 = sbr.rel (0) target = $region13
    $region12: #{tpu_custom_call.1} parent=1 // pred_region
      %34 = dma.done [#allocation5], 128
    $region13: #{tpu_custom_call.1} parent=1 // pred_fallthru
      _
    // Predicated region
    $region14: #{tpu_custom_call.1} parent=1 // pred_check
      _
    $region15: #{tpu_custom_call.1} parent=1 // pred_check_branch
      %36 = sbr.rel (0) target = $region17
    $region16: #{tpu_custom_call.1} parent=1 // pred_region
      %37 = dma.done [#allocation8], 128
    $region17: #{tpu_custom_call.1} parent=1 // pred_fallthru
      _
    %v38 = vld [vmem:[#allocation4] sm:$0xff]
    %v39 = vld [vmem:[#allocation7] sm:$0xff]
    %41 = vrot.lane.b32.xlu0 %v39, 32
    %v42 = vpop.permute.xlu0 %41
    %vm44 = vcmask 261120
    %v45 = vsel %vm44, %v39, %v42
    %v46 = vadd.f32 %v38, %v45
    %vm47 = vcmask 523264
    %48 = vst.msk [vmem:[#allocation9] sm:$0xff] %vm47, %v46
    // Predicated region
    $region18: #{tpu_custom_call.1} parent=1 // pred_check
      _
    $region19: #{tpu_custom_call.1} parent=1 // pred_check_branch
      %50 = sbr.rel (0) target = $region21
    $region20: #{tpu_custom_call.1} parent=1 // pred_region
      %s52 = ssub.s32 128, 128
      %53 = vsyncadd [#allocation6], %s52
      %s55 = sshll.u32 [#allocation9], 4
      %s56 = int_to_ptr.vmem [resolvable:$true] %s55
      %58 = dma.vmem_to_hbm [thread:$0]  %s56, 128, %s3, [#allocation6]
    $region21: #{tpu_custom_call.1} parent=1 // pred_fallthru
      _
    // Predicated region
    $region22: #{tpu_custom_call.1} parent=1 // pred_check
      _
    $region23: #{tpu_custom_call.1} parent=1 // pred_check_branch
      %60 = sbr.rel (0) target = $region25
    $region24: #{tpu_custom_call.1} parent=1 // pred_region
      %61 = dma.done [#allocation6], 128
    $region25: #{tpu_custom_call.1} parent=1 // pred_fallthru
      _
    %62 = vsyncpa [#allocation5], 1
    %63 = vsyncpa [#allocation8], 1
    %64 = vsyncpa [#allocation6], 1

</llo_original>
